<compile_context>
chip_gen: v7x
topology: tpu7x:2x2x1
jax: 0.10.0
libtpu: 0.0.40
codegen_flags: <defaults>
</compile_context>

<pallas_src>
import functools

import jax
import jax.numpy as jnp
from jax.experimental import pallas as pl
from jax.experimental.pallas import tpu as pltpu

EPS = 0.001  # nn.BatchNorm2d(eps=0.001)


# ----------------------------- Pass 1 kernel ---------------------------------
def _conv_pool_stats_kernel(patches_ref, w_ref, b_ref, y_ref, s_ref,
                            *, cin, cconv):
    """conv (MXU) + maxpool (from conv-patch rows) + per-tile BN partial stats.

    patches_ref : (9*Cin, TM)   transposed im2col tile (pixels on lanes)
    w_ref       : (Cconv, 9*Cin)
    b_ref       : (Cconv, 1)
    y_ref       : (Cout, TM)    pre-BN activations (conv rows then pool rows)
    s_ref       : (1, Cout, 2)  per-tile per-channel [sum, sum-of-squares]
    """
    patches = patches_ref[...]                                        # (9*Cin, TM)

    # ---- conv branch: (Cconv, 9*Cin) @ (9*Cin, TM) on the MXU + bias ----
    y_conv = jnp.dot(w_ref[...], patches,
                     preferred_element_type=jnp.float32) + b_ref[...]  # (Cconv, TM)

    # ---- pool branch: 2x2/stride-2 max == max over conv-patch row blocks
    #      (kh,kw) in {(1,1),(1,2),(2,1),(2,2)} i.e. blocks 4,5,7,8 ----
    p11 = patches[4 * cin:5 * cin, :]
    p12 = patches[5 * cin:6 * cin, :]
    p21 = patches[7 * cin:8 * cin, :]
    p22 = patches[8 * cin:9 * cin, :]
    y_pool = jnp.maximum(jnp.maximum(p11, p12), jnp.maximum(p21, p22))  # (Cin, TM)

    # ---- write branches into disjoint channel (sublane) slices: no concat ----
    y_ref[0:cconv, :] = y_conv
    y_ref[cconv:cconv + cin, :] = y_pool

    # ---- per-tile partial BN statistics (lane-axis reductions on VMEM tile) --
    y = y_ref[...]                                                    # (Cout, TM)
    s_ref[0, :, 0:1] = jnp.sum(y, axis=1, keepdims=True)
    s_ref[0, :, 1:2] = jnp.sum(y * y, axis=1, keepdims=True)


# ----------------------------- Pass 2 kernel ---------------------------------
def _bn_relu_kernel(y_ref, scale_ref, shift_ref, out_ref):
    """Fused BN affine + ReLU: out = max(y * scale + shift, 0)."""
    out_ref[...] = jnp.maximum(y_ref[...] * scale_ref[...] + shift_ref[...], 0.0)


# ------------------------------- wrapper --------------------------------------
def _pick_tm(m, target):
    """Largest multiple of 128 that divides m and is <= target (fallback: m)."""
    best = None
    t = 128
    while t <= min(m, target):
        if m % t == 0:
            best = t
        t += 128
    return best if best is not None else m


@jax.jit
def downsampler_block(x_nchw, w_oihw, b, gamma, beta):
    """Forward pass of DownsamplerBlock.  Returns NCHW output (like PyTorch)."""
    N, Cin, H, W = x_nchw.shape
    assert H % 2 == 0 and W % 2 == 0, "DownsamplerBlock expects even H, W"
    Cconv = w_oihw.shape[0]
    Cout = Cconv + Cin
    Ho, Wo = H // 2, W // 2
    M = N * Ho * Wo
    TM1 = _pick_tm(M, 512)       # pass 1: (9*Cin + Cout) rows per tile
    TM2 = _pick_tm(M, 2048)      # pass 2: only Cout rows per tile -> go bigger
    G1, G2 = M // TM1, M // TM2

    # -------- glue (plain JAX): transposed im2col, pixels on the lane axis ----
    # TODO(synk): im2col could be moved in-kernel (halo DMA of x) to cut HBM
    # traffic further; kept in the (jitted) wrapper here for clarity.
    x = x_nchw.astype(jnp.float32)
    xp = jnp.pad(x, ((0, 0), (0, 0), (1, 1), (1, 1)))                 # pad=1
    cols = [
        jnp.transpose(xp[:, :, kh:kh + 2 * Ho:2, kw:kw + 2 * Wo:2],
                      (1, 0, 2, 3)).reshape(Cin, M)
        for kh in range(3) for kw in range(3)
    ]
    patches = jnp.concatenate(cols, axis=0)                           # (9*Cin, M)

    # weight: OIHW -> (O, kh, kw, cin) -> (Cconv, 9*Cin), matching patch rows
    w_mat = jnp.transpose(w_oihw, (0, 2, 3, 1)).reshape(Cconv, 9 * Cin)
    w_mat = w_mat.astype(jnp.float32)
    b_col = b.reshape(Cconv, 1).astype(jnp.float32)

    kernel1 = functools.partial(_conv_pool_stats_kernel, cin=Cin, cconv=Cconv)

    # -------- pass 1: conv + pool + partial stats, tiled over M ---------------
    y_flat, s = pl.pallas_call(
        kernel1,
        out_shape=(
            jax.ShapeDtypeStruct((Cout, M), jnp.float32),
            jax.ShapeDtypeStruct((G1, Cout, 2), jnp.float32),
        ),
        grid=(G1,),
        in_specs=[
            pl.BlockSpec((9 * Cin, TM1), lambda g: (0, g)),
            pl.BlockSpec((Cconv, 9 * Cin), lambda g: (0, 0)),
            pl.BlockSpec((Cconv, 1), lambda g: (0, 0)),
        ],
        out_specs=(
            pl.BlockSpec((Cout, TM1), lambda g: (0, g)),
            pl.BlockSpec((1, Cout, 2), lambda g: (g, 0, 0)),
        ),
        compiler_params=pltpu.CompilerParams(
            dimension_semantics=("parallel",)),
    )(patches, w_mat, b_col)

    # -------- fold BN into one scale/shift per channel (tiny XLA math) --------
    stats = jnp.sum(s, axis=0)                                        # (Cout, 2)
    mean = stats[:, 0] / M
    var = jnp.maximum(stats[:, 1] / M - mean * mean, 0.0)             # biased var
    scale = gamma.astype(jnp.float32) * jax.lax.rsqrt(var + EPS)
    shift = beta.astype(jnp.float32) - mean * scale

    # -------- pass 2: fused BN affine + ReLU, in place, tiled over M ----------
    out_flat = pl.pallas_call(
        _bn_relu_kernel,
        out_shape=jax.ShapeDtypeStruct((Cout, M), jnp.float32),
        grid=(G2,),
        in_specs=[
            pl.BlockSpec((Cout, TM2), lambda g: (0, g)),
            pl.BlockSpec((Cout, 1), lambda g: (0, 0)),
            pl.BlockSpec((Cout, 1), lambda g: (0, 0)),
        ],
        out_specs=pl.BlockSpec((Cout, TM2), lambda g: (0, g)),
        input_output_aliases={0: 0},     # reuse y's HBM buffer for the output
        compiler_params=pltpu.CompilerParams(
            dimension_semantics=("parallel",)),
    )(y_flat, scale.reshape(Cout, 1), shift.reshape(Cout, 1))

    # (Cout, M) -> (Cout, N, Ho, Wo) -> NCHW
    return jnp.transpose(out_flat.reshape(Cout, N, Ho, Wo), (1, 0, 2, 3))


# ------------------------------ reference -------------------------------------
def reference(x_nchw, w, b, gamma, beta, eps=EPS):
    """Pure-JAX reference mirroring the PyTorch forward (training-mode BN)."""
    conv = jax.lax.conv_general_dilated(
        x_nchw, w, window_strides=(2, 2), padding=((1, 1), (1, 1)),
        dimension_numbers=('NCHW', 'OIHW', 'NCHW'))
    conv = conv + b[None, :, None, None]
    pool = jax.lax.reduce_window(x_nchw, -jnp.inf, jax.lax.max,
                                 (1, 1, 2, 2), (1, 1, 2, 2), 'VALID')
    y = jnp.concatenate([conv, pool], axis=1)
    mean = jnp.mean(y, axis=(0, 2, 3), keepdims=True)
    var = jnp.mean((y - mean) ** 2, axis=(0, 2, 3), keepdims=True)
    y_hat = (y - mean) / jnp.sqrt(var + eps)
    out = gamma[None, :, None, None] * y_hat + beta[None, :, None, None]
    return jnp.maximum(out, 0.0)


if __name__ == "__main__":
    # Small shapes consistent with the module: ninput=4, noutput=8
    N, Cin, H, W = 2, 4, 16, 16
    noutput = 8
    Cconv = noutput - Cin

    key = jax.random.PRNGKey(0)
    kx, kw, kb = jax.random.split(key, 3)
    x = jax.random.normal(kx, (N, Cin, H, W), dtype=jnp.float32)
    w = jax.random.normal(kw, (Cconv, Cin, 3, 3), dtype=jnp.float32) * 0.1
    b = jax.random.normal(kb, (Cconv,), dtype=jnp.float32) * 0.1
    gamma = jnp.ones((noutput,), dtype=jnp.float32)   # PyTorch BN default init
    beta = jnp.zeros((noutput,), dtype=jnp.float32)

    out_nchw = downsampler_block(x, w, b, gamma, beta)
    out_nchw = jax.block_until_ready(out_nchw)

    ref = reference(x, w, b, gamma, beta)
    assert out_nchw.shape == (N, noutput, H // 2, W // 2)
    assert jnp.allclose(out_nchw, ref, rtol=1e-4, atol=1e-4), "mismatch vs reference"

    print("KERNEL_OK")
</pallas_src>

<mosaic_0001>
module attributes {stable_mosaic.version = 11 : i64} {
  func.func @_conv_pool_stats_kernel(%arg0: i32, %arg1: memref<36x128xf32, #tpu.memory_space<vmem>>, %arg2: memref<4x36xf32, #tpu.memory_space<vmem>>, %arg3: memref<4x1xf32, #tpu.memory_space<vmem>>, %arg4: memref<8x128xf32, #tpu.memory_space<vmem>>, %arg5: memref<1x8x2xf32, #tpu.memory_space<vmem>>) attributes {dimension_semantics = [#tpu.dimension_semantics<parallel>], iteration_bounds = array<i64: 1>, scalar_prefetch = 0 : i64, scratch_operands = 0 : i64, tpu.core_type = #tpu.core_type<tc>, window_params = [{transform_indices = @transform_0, window_bounds = array<i64: 36, 128>}, {pipeline_mode = #tpu.pipeline_mode<synchronous>, transform_indices = @transform_1, window_bounds = array<i64: 4, 36>}, {pipeline_mode = #tpu.pipeline_mode<synchronous>, transform_indices = @transform_2, window_bounds = array<i64: 4, 1>}, {transform_indices = @transform_3, window_bounds = array<i64: 8, 128>}, {transform_indices = @transform_4, window_bounds = array<i64: 1, 8, 2>}]} {
    %c0 = arith.constant 0 : index
    %c0_0 = arith.constant 0 : index
    %0 = vector.load %arg1[%c0, %c0_0] : memref<36x128xf32, #tpu.memory_space<vmem>>, vector<36x128xf32>
    %c0_1 = arith.constant 0 : index
    %c0_2 = arith.constant 0 : index
    %1 = vector.load %arg2[%c0_1, %c0_2] : memref<4x36xf32, #tpu.memory_space<vmem>>, vector<4x36xf32>
    %cst = arith.constant dense<0.000000e+00> : vector<4x128xf32>
    %2 = tpu.matmul %1, %0, %cst {dimension_numbers = #tpu.dot_dimension_numbers<[1], [0], [0], [1], [0, 0, 1, 1], [], []>} : vector<4x36xf32>, vector<36x128xf32>, vector<4x128xf32> -> vector<4x128xf32>
    %c0_3 = arith.constant 0 : index
    %c0_4 = arith.constant 0 : index
    %3 = vector.load %arg3[%c0_3, %c0_4] : memref<4x1xf32, #tpu.memory_space<vmem>>, vector<4x1xf32>
    %4 = vector.broadcast %3 : vector<4x1xf32> to vector<4x128xf32>
    %5 = arith.addf %2, %4 : vector<4x128xf32>
    %6 = vector.extract_strided_slice %0 {offsets = [16, 0], sizes = [4, 128], strides = [1, 1]} : vector<36x128xf32> to vector<4x128xf32>
    %7 = vector.extract_strided_slice %0 {offsets = [20, 0], sizes = [4, 128], strides = [1, 1]} : vector<36x128xf32> to vector<4x128xf32>
    %8 = vector.extract_strided_slice %0 {offsets = [28, 0], sizes = [4, 128], strides = [1, 1]} : vector<36x128xf32> to vector<4x128xf32>
    %9 = vector.extract_strided_slice %0 {offsets = [32, 0], sizes = [4, 128], strides = [1, 1]} : vector<36x128xf32> to vector<4x128xf32>
    %10 = arith.maximumf %6, %7 : vector<4x128xf32>
    %11 = arith.maximumf %8, %9 : vector<4x128xf32>
    %12 = arith.maximumf %10, %11 : vector<4x128xf32>
    %c0_5 = arith.constant 0 : index
    %c0_6 = arith.constant 0 : index
    %13 = vector.load %arg4[%c0_5, %c0_6] : memref<8x128xf32, #tpu.memory_space<vmem>>, vector<4x128xf32>
    tpu.vector_store %arg4[%c0_5, %c0_6], %5 {strides = array<i32>} : memref<8x128xf32, #tpu.memory_space<vmem>>, vector<4x128xf32>,
    %c4 = arith.constant 4 : index
    %c0_7 = arith.constant 0 : index
    %14 = vector.load %arg4[%c4, %c0_7] : memref<8x128xf32, #tpu.memory_space<vmem>>, vector<4x128xf32>
    tpu.vector_store %arg4[%c4, %c0_7], %12 {strides = array<i32>} : memref<8x128xf32, #tpu.memory_space<vmem>>, vector<4x128xf32>,
    %c0_8 = arith.constant 0 : index
    %c0_9 = arith.constant 0 : index
    %15 = vector.load %arg4[%c0_8, %c0_9] : memref<8x128xf32, #tpu.memory_space<vmem>>, vector<8x128xf32>
    %cst_10 = arith.constant dense<0.000000e+00> : vector<8xf32>
    %16 = vector.multi_reduction <add>, %15, %cst_10 [1] : vector<8x128xf32> to vector<8xf32>
    %17 = vector.shape_cast %16 : vector<8xf32> to vector<8x1xf32>
    %c0_11 = arith.constant 0 : index
    %c0_12 = arith.constant 0 : index
    %c0_13 = arith.constant 0 : index
    %18 = vector.load %arg5[%c0_11, %c0_12, %c0_13] : memref<1x8x2xf32, #tpu.memory_space<vmem>>, vector<1x8x1xf32>
    %19 = vector.shape_cast %18 : vector<1x8x1xf32> to vector<8x1xf32>
    %20 = vector.shape_cast %17 : vector<8x1xf32> to vector<1x8x1xf32>
    tpu.vector_store %arg5[%c0_11, %c0_12, %c0_13], %20 {strides = array<i32>} : memref<1x8x2xf32, #tpu.memory_space<vmem>>, vector<1x8x1xf32>,
    %21 = arith.mulf %15, %15 : vector<8x128xf32>
    %cst_14 = arith.constant dense<0.000000e+00> : vector<8xf32>
    %22 = vector.multi_reduction <add>, %21, %cst_14 [1] : vector<8x128xf32> to vector<8xf32>
    %23 = vector.shape_cast %22 : vector<8xf32> to vector<8x1xf32>
    %c0_15 = arith.constant 0 : index
    %c0_16 = arith.constant 0 : index
    %c1 = arith.constant 1 : index
    %24 = vector.load %arg5[%c0_15, %c0_16, %c1] : memref<1x8x2xf32, #tpu.memory_space<vmem>>, vector<1x8x1xf32>
    %25 = vector.shape_cast %24 : vector<1x8x1xf32> to vector<8x1xf32>
    %26 = vector.shape_cast %23 : vector<8x1xf32> to vector<1x8x1xf32>
    tpu.vector_store %arg5[%c0_15, %c0_16, %c1], %26 {strides = array<i32>} : memref<1x8x2xf32, #tpu.memory_space<vmem>>, vector<1x8x1xf32>,
    return
  }
  func.func @transform_0(%arg0: i32) -> (i32, i32) {
    %c0_i32 = arith.constant 0 : i32
    %c0_i32_0 = arith.constant 0 : i32
    return %c0_i32, %arg0 : i32, i32
  }
  func.func @transform_1(%arg0: i32) -> (i32, i32) {
    %c0_i32 = arith.constant 0 : i32
    %c0_i32_0 = arith.constant 0 : i32
    %c0_i32_1 = arith.constant 0 : i32
    return %c0_i32, %c0_i32_0 : i32, i32
  }
  func.func @transform_2(%arg0: i32) -> (i32, i32) {
    %c0_i32 = arith.constant 0 : i32
    %c0_i32_0 = arith.constant 0 : i32
    %c0_i32_1 = arith.constant 0 : i32
    return %c0_i32, %c0_i32_0 : i32, i32
  }
  func.func @transform_3(%arg0: i32) -> (i32, i32) {
    %c0_i32 = arith.constant 0 : i32
    %c0_i32_0 = arith.constant 0 : i32
    return %c0_i32, %arg0 : i32, i32
  }
  func.func @transform_4(%arg0: i32) -> (i32, i32, i32) {
    %c0_i32 = arith.constant 0 : i32
    %c0_i32_0 = arith.constant 0 : i32
    %c0_i32_1 = arith.constant 0 : i32
    return %arg0, %c0_i32, %c0_i32_0 : i32, i32, i32
  }
}

module attributes {stable_mosaic.version = 11 : i64} {
  func.func @_bn_relu_kernel(%arg0: i32, %arg1: memref<8x128xf32, #tpu.memory_space<vmem>>, %arg2: memref<8x1xf32, #tpu.memory_space<vmem>>, %arg3: memref<8x1xf32, #tpu.memory_space<vmem>>, %arg4: memref<8x128xf32, #tpu.memory_space<vmem>>) attributes {dimension_semantics = [#tpu.dimension_semantics<parallel>], iteration_bounds = array<i64: 1>, scalar_prefetch = 0 : i64, scratch_operands = 0 : i64, tpu.core_type = #tpu.core_type<tc>, window_params = [{transform_indices = @transform_0, window_bounds = array<i64: 8, 128>}, {pipeline_mode = #tpu.pipeline_mode<synchronous>, transform_indices = @transform_1, window_bounds = array<i64: 8, 1>}, {pipeline_mode = #tpu.pipeline_mode<synchronous>, transform_indices = @transform_2, window_bounds = array<i64: 8, 1>}, {transform_indices = @transform_3, window_bounds = array<i64: 8, 128>}]} {
    %c0 = arith.constant 0 : index
    %c0_0 = arith.constant 0 : index
    %0 = vector.load %arg1[%c0, %c0_0] : memref<8x128xf32, #tpu.memory_space<vmem>>, vector<8x128xf32>
    %c0_1 = arith.constant 0 : index
    %c0_2 = arith.constant 0 : index
    %1 = vector.load %arg2[%c0_1, %c0_2] : memref<8x1xf32, #tpu.memory_space<vmem>>, vector<8x1xf32>
    %2 = vector.broadcast %1 : vector<8x1xf32> to vector<8x128xf32>
    %3 = arith.mulf %0, %2 : vector<8x128xf32>
    %c0_3 = arith.constant 0 : index
    %c0_4 = arith.constant 0 : index
    %4 = vector.load %arg3[%c0_3, %c0_4] : memref<8x1xf32, #tpu.memory_space<vmem>>, vector<8x1xf32>
    %5 = vector.broadcast %4 : vector<8x1xf32> to vector<8x128xf32>
    %6 = arith.addf %3, %5 : vector<8x128xf32>
    %cst = arith.constant 0.000000e+00 : f32
    %7 = vector.broadcast %cst : f32 to vector<8x128xf32>
    %8 = arith.maximumf %6, %7 : vector<8x128xf32>
    %c0_5 = arith.constant 0 : index
    %c0_6 = arith.constant 0 : index
    %9 = vector.load %arg4[%c0_5, %c0_6] : memref<8x128xf32, #tpu.memory_space<vmem>>, vector<8x128xf32>
    tpu.vector_store %arg4[%c0_5, %c0_6], %8 {strides = array<i32>} : memref<8x128xf32, #tpu.memory_space<vmem>>, vector<8x128xf32>,
    return
  }
  func.func @transform_0(%arg0: i32) -> (i32, i32) {
    %c0_i32 = arith.constant 0 : i32
    %c0_i32_0 = arith.constant 0 : i32
    return %c0_i32, %arg0 : i32, i32
  }
  func.func @transform_1(%arg0: i32) -> (i32, i32) {
    %c0_i32 = arith.constant 0 : i32
    %c0_i32_0 = arith.constant 0 : i32
    %c0_i32_1 = arith.constant 0 : i32
    return %c0_i32, %c0_i32_0 : i32, i32
  }
  func.func @transform_2(%arg0: i32) -> (i32, i32) {
    %c0_i32 = arith.constant 0 : i32
    %c0_i32_0 = arith.constant 0 : i32
    %c0_i32_1 = arith.constant 0 : i32
    return %c0_i32, %c0_i32_0 : i32, i32
  }
  func.func @transform_3(%arg0: i32) -> (i32, i32) {
    %c0_i32 = arith.constant 0 : i32
    %c0_i32_0 = arith.constant 0 : i32
    return %c0_i32, %arg0 : i32, i32
  }
}

</mosaic_0001>

<llo_original>
// kernel: downsampler_block.2
$region0: #{downsampler_block.2}
  #allocation0 [shape = 'u32[]', space=smem, size = 0x4, offset = 0x4, fixed_abs, tag = 'smem constant byte address 0x4 - core index']
  #allocation1 [shape = 'u32[144,128]{1,0:T(1,128)}', space=vmem, size = 0x12000, scoped, tag = 'internal scratch']
  %s0 = inlined_call_operand.vmem [shape: f32[36,128], index: 0, kind: input, shape index: {}]
  %s1 = inlined_call_operand.vmem [shape: f32[4,36], index: 1, kind: input, shape index: {}]
  %s2 = inlined_call_operand.vmem [shape: f32[4,1], index: 2, kind: input, shape index: {}]
  %s3 = inlined_call_operand.vmem [shape: f32[8,128], index: 3, kind: output, shape index: {0}]
  %s4 = inlined_call_operand.vmem [shape: f32[1,8,2], index: 4, kind: output, shape index: {1}]
  %5 = xla_tuple %s3, %s4
  %s6 = sld [smem:[#allocation0]]
  $region30: #{downsampler_block.2} parent=0
    _
  %s8 = ssub.s32 1, %s6
  %s9 = scalar_select 0, %s8, %s6
  // Predicated region
  $region2: #{downsampler_block.2} parent=0 // pred_check
    _
  $region3: #{downsampler_block.2} parent=0 // pred_check_branch
    %11 = sbr.rel (0) target = $region5
  $region4: #{downsampler_block.2} parent=0 // pred_region
    _
  $region5: #{downsampler_block.2} parent=0 // pred_fallthru
    _
  // Predicated region
  $region6: #{downsampler_block.2} parent=0 // pred_check
    _
  $region7: #{downsampler_block.2} parent=0 // pred_check_branch
    %13 = sbr.rel (0) target = $region9
  $region8: #{downsampler_block.2} parent=0 // pred_region
    _
  $region9: #{downsampler_block.2} parent=0 // pred_fallthru
    _
  // Predicated region
  $region10: #{downsampler_block.2} parent=0 // pred_check
    _
  $region11: #{downsampler_block.2} parent=0 // pred_check_branch
    %15 = sbr.rel (0) target = $region13
  $region12: #{downsampler_block.2} parent=0 // pred_region
    _
  $region13: #{downsampler_block.2} parent=0 // pred_fallthru
    _
  %v16 = vld [vmem:[%s0] sm:$0xff]
  %v17 = vld [vmem:[%s0 + $0x8] sm:$0xff]
  %v18 = vld [vmem:[%s0 + $0x10] sm:$0xff]
  %v19 = vld [vmem:[%s0 + $0x18] sm:$0xff]
  %v20 = vld [vmem:[%s0 + $0x20] sm:$0xf]
  %v21 = vld [vmem:[%s1] sm:$0xf]
  %v22 = vld [vmem:[%s2] sm:$0xf]
  %24 = vset.pattern.permute.xlu0 0
  %25 = vperm.xlu0 %24, %v22
  %v26 = vpop.permute.xlu0 %25
  %vm28 = vcmask 293888
  %v30 = vsel %vm28, %v21, 0
  %vm32 = vcmask 1043456
  %v34 = vsel %vm32, %v20, 0
  %36 = vmatprep.subr.mxu0 0.0
  %37 = vmatpush1.msra.mxu0 %v16
  %38 = vmatprep.subr.mxu0 0.0
  %39 = vmatpush1.msra.mxu0 %v17
  %40 = vmatprep.subr.mxu0 0.0
  %41 = vmatpush1.msra.mxu0 %v18
  %42 = vmatprep.subr.mxu0 0.0
  %43 = vmatpush1.msra.mxu0 %v19
  %44 = vmatprep.subr.mxu0 0.0
  %45 = vmatpush1.msra.mxu0 %v34
  %46 = vmatprep.subr.mxu0 0.0
  %47 = vmatpush1.msra.mxu0 0.0
  %48 = vmatprep.subr.mxu0 0.0
  %49 = vmatpush1.msra.mxu0 0.0
  %50 = vmatprep.subr.mxu0 0.0
  %51 = vmatpush1.msra.mxu0 0.0
  %52 = vmatprep.subr.mxu0 0.0
  %53 = vmatpush1.msra.mxu0 0.0
  %54 = vmatprep.subr.mxu0 0.0
  %55 = vmatpush1.msra.mxu0 0.0
  %56 = vmatprep.subr.mxu0 0.0
  %57 = vmatpush1.msra.mxu0 0.0
  %58 = vmatprep.subr.mxu0 0.0
  %59 = vmatpush1.msra.mxu0 0.0
  %60 = vmatprep.subr.mxu0 0.0
  %61 = vmatpush1.msra.mxu0 0.0
  %62 = vmatprep.subr.mxu0 0.0
  %63 = vmatpush1.msra.mxu0 0.0
  %64 = vmatprep.subr.mxu0 0.0
  %65 = vmatpush1.msra.mxu0 0.0
  %66 = vmatprep.subr.mxu0 0.0
  %67 = vmatpush1.msra.mxu0 0.0
  %68 = vmatprep.subr.mxu0 0.0
  %69 = vmatpush1.msra.mxu0 0.0
  %70 = vmatprep.subr.mxu0 0.0
  %71 = vmatpush1.msra.mxu0 0.0
  %72 = vmatprep.subr.mxu0 0.0
  %73 = vmatpush1.msra.mxu0 0.0
  %74 = vmatprep.subr.mxu0 0.0
  %75 = vmatpush1.msra.mxu0 0.0
  %76 = vmatprep.subr.mxu0 0.0
  %77 = vmatpush1.msra.mxu0 0.0
  %78 = vmatprep.subr.mxu0 0.0
  %79 = vmatpush1.msra.mxu0 0.0
  %80 = vmatprep.subr.mxu0 0.0
  %81 = vmatpush1.msra.mxu0 0.0
  %82 = vmatprep.subr.mxu0 0.0
  %83 = vmatpush1.msra.mxu0 0.0
  %84 = vmatprep.subr.mxu0 0.0
  %85 = vmatpush1.msra.mxu0 0.0
  %86 = vmatprep.subr.mxu0 0.0
  %87 = vmatpush1.msra.mxu0 0.0
  %88 = vmatprep.subr.mxu0 0.0
  %89 = vmatpush1.msra.mxu0 0.0
  %90 = vmatprep.subr.mxu0 0.0
  %91 = vmatpush1.msra.mxu0 0.0
  %92 = vmatprep.subr.mxu0 0.0
  %93 = vmatpush1.msra.mxu0 0.0
  %94 = vmatprep.subr.mxu0 0.0
  %95 = vmatpush1.msra.mxu0 0.0
  %96 = vmatprep.subr.mxu0 0.0
  %97 = vmatpush1.msra.mxu0 0.0
  %98 = vmatprep.subr.mxu0 0.0
  %99 = vmatpush1.msra.mxu0 0.0
  %100 = vmatprep.mubr.f32.mxu0 0.0
  %101 = vmatmul.mubr.f32.gmra.mrb[0].mxu0 %v30
  %v102 = vpop.f32.mrb[0].mxu0
  %v103 = vadd.f32 %v26, %v102
  %v104 = vpop.f32.mrb[0].mxu0
  %105 = vdwg.mxu0
  %v107 = vrot.slane %v18, 4
  %v109 = vmax.f32 %v18, %v107
  %v110 = vrot.slane %v20, 4
  %v112 = vmax.f32 %v19, %v110
  %v114 = vrot.slane %v112, 4
  %v116 = vmax.f32 %v109, %v114
  %117 = vst [vmem:[%s3] sm:$0xf] %v103
  %118 = vst [vmem:[%s3 + $0x4] sm:$0xf] %v116
  %v119 = vld [vmem:[%s3] sm:$0xff]
  %120 = vadd.xlane.f32.xlu0 %v119
  %v121 = vpop.xlane.xlu0 %120
  %vm122 = vcmask 7168
  %123 = vst.msk [vmem:[%s4] sm:$0xff] %vm122, %v121
  %v124 = vmul.f32 %v119, %v119
  %125 = vadd.xlane.f32.xlu0 %v124
  %v126 = vpop.xlane.xlu0 %125
  %vm127 = vcmask 15368
  %128 = vst.msk [vmem:[%s4] sm:$0xff] %vm127, %v126
  // Predicated region
  $region14: #{downsampler_block.2} parent=0 // pred_check
    _
  $region15: #{downsampler_block.2} parent=0 // pred_check_branch
    %130 = sbr.rel (0) target = $region17
  $region16: #{downsampler_block.2} parent=0 // pred_region
    _
  $region17: #{downsampler_block.2} parent=0 // pred_fallthru
    _
  // Predicated region
  $region18: #{downsampler_block.2} parent=0 // pred_check
    _
  $region19: #{downsampler_block.2} parent=0 // pred_check_branch
    %132 = sbr.rel (0) target = $region21
  $region20: #{downsampler_block.2} parent=0 // pred_region
    _
  $region21: #{downsampler_block.2} parent=0 // pred_fallthru
    _
  // Predicated region
  $region22: #{downsampler_block.2} parent=0 // pred_check
    _
  $region23: #{downsampler_block.2} parent=0 // pred_check_branch
    %134 = sbr.rel (0) target = $region25
  $region24: #{downsampler_block.2} parent=0 // pred_region
    _
  $region25: #{downsampler_block.2} parent=0 // pred_fallthru
    _
  // Predicated region
  $region26: #{downsampler_block.2} parent=0 // pred_check
    _
  $region27: #{downsampler_block.2} parent=0 // pred_check_branch
    %136 = sbr.rel (0) target = $region29
  $region28: #{downsampler_block.2} parent=0 // pred_region
    _
  $region29: #{downsampler_block.2} parent=0 // pred_fallthru
    _

// kernel: downsampler_block.3
$region0: #{downsampler_block.3}
  #allocation0 [shape = 'u32[]', space=smem, size = 0x4, offset = 0x4, fixed_abs, tag = 'smem constant byte address 0x4 - core index']
  #allocation1 [shape = 'u32[144,128]{1,0:T(1,128)}', space=vmem, size = 0x12000, scoped, tag = 'internal scratch']
  %s0 = inlined_call_operand.vmem [shape: f32[8,128], index: 0, kind: input, shape index: {}, may-alias: {0,3}]
  %s1 = inlined_call_operand.vmem [shape: f32[8,1], index: 1, kind: input, shape index: {}]
  %s2 = inlined_call_operand.vmem [shape: f32[8,1], index: 2, kind: input, shape index: {}]
  %s3 = inlined_call_operand.vmem [shape: f32[8,128], index: 3, kind: output, shape index: {}, may-alias: {0,3}]
  %s4 = sld [smem:[#allocation0]]
  $region22: #{downsampler_block.3} parent=0
    _
  %s6 = ssub.s32 1, %s4
  %s7 = scalar_select 0, %s6, %s4
  // Predicated region
  $region2: #{downsampler_block.3} parent=0 // pred_check
    _
  $region3: #{downsampler_block.3} parent=0 // pred_check_branch
    %9 = sbr.rel (0) target = $region5
  $region4: #{downsampler_block.3} parent=0 // pred_region
    _
  $region5: #{downsampler_block.3} parent=0 // pred_fallthru
    _
  // Predicated region
  $region6: #{downsampler_block.3} parent=0 // pred_check
    _
  $region7: #{downsampler_block.3} parent=0 // pred_check_branch
    %11 = sbr.rel (0) target = $region9
  $region8: #{downsampler_block.3} parent=0 // pred_region
    _
  $region9: #{downsampler_block.3} parent=0 // pred_fallthru
    _
  // Predicated region
  $region10: #{downsampler_block.3} parent=0 // pred_check
    _
  $region11: #{downsampler_block.3} parent=0 // pred_check_branch
    %13 = sbr.rel (0) target = $region13
  $region12: #{downsampler_block.3} parent=0 // pred_region
    _
  $region13: #{downsampler_block.3} parent=0 // pred_fallthru
    _
  %v14 = vld [vmem:[%s0] sm:$0xff]
  %v15 = vld [vmem:[%s1] sm:$0xff]
  %17 = vset.pattern.permute.xlu0 0
  %18 = vperm.xlu0 %17, %v15
  %v19 = vpop.permute.xlu0 %18
  %v21 = vmul.f32 %v14, %v19
  %v22 = vld [vmem:[%s2] sm:$0xff]
  %24 = vset.pattern.permute.xlu0 0
  %25 = vperm.xlu0 %24, %v22
  %v26 = vpop.permute.xlu0 %25
  %v28 = vadd.f32 %v21, %v26
  %v29 = vmax.f32 %v28, 0.0
  %30 = vst [vmem:[%s3] sm:$0xff] %v29
  // Predicated region
  $region14: #{downsampler_block.3} parent=0 // pred_check
    _
  $region15: #{downsampler_block.3} parent=0 // pred_check_branch
    %32 = sbr.rel (0) target = $region17
  $region16: #{downsampler_block.3} parent=0 // pred_region
    _
  $region17: #{downsampler_block.3} parent=0 // pred_fallthru
    _
  // Predicated region
  $region18: #{downsampler_block.3} parent=0 // pred_check
    _
  $region19: #{downsampler_block.3} parent=0 // pred_check_branch
    %34 = sbr.rel (0) target = $region21
  $region20: #{downsampler_block.3} parent=0 // pred_region
    _
  $region21: #{downsampler_block.3} parent=0 // pred_fallthru
    _

</llo_original>
